<compile_context>
chip_gen: v7x
topology: tpu7x:2x2x1
jax: 0.10.0
libtpu: 0.0.40
codegen_flags: <defaults>
</compile_context>

<pallas_src>
import functools

import jax
import jax.numpy as jnp
from jax.experimental import pallas as pl
from jax.experimental.pallas import tpu as pltpu


def _round_up(x, m):
    return ((x + m - 1) // m) * m


def _patch_embed_kernel(patch_ref, w_ref, pos_ref, out_ref, *, token_tile):
    # patch_ref: (tt, Kp)     bf16 — token-row tile of flattened patch pixels
    #                                (row 0 of every batch is an all-zero dummy
    #                                 row standing in for the cls slot)
    # w_ref:     (Kp, D)      bf16 — transposed Linear weight, VMEM-resident
    # pos_ref:   (T_pad, D)   f32  — full positional table, VMEM-resident
    #                                (row 0 already holds cls_token + pos[0])
    # out_ref:   (tt, D)      f32
    ti = pl.program_id(1)
    emb = jnp.dot(patch_ref[...], w_ref[...],
                  preferred_element_type=jnp.float32)        # MXU, bf16 in / f32 acc
    start = pl.multiple_of(ti * token_tile, token_tile)
    pos = pos_ref[pl.ds(start, token_tile), :]               # resident table, no HBM stream
    out_ref[...] = (emb + pos).astype(out_ref.dtype)         # f32 add (v5e-friendly)


def patch_embedding_forward(x, weight, cls_token, pos_embedding, patch_size,
                            out_dtype=jnp.float32):
    """ViT PatchEmbedding forward.

    x: (b, c, H, W) float32 (NCHW).  weight: (dim, patch_dim) — PyTorch
    nn.Linear(patch_dim, dim, bias=False) layout.  cls_token: (1, 1, dim).
    pos_embedding: (1, num_patches + 1, dim).  Returns (b, num_patches+1, dim).
    """
    b, c, H, W = x.shape
    assert H % patch_size == 0 and W % patch_size == 0
    nh, nw = H // patch_size, W // patch_size
    num_patches = nh * nw
    patch_dim_raw = patch_size * patch_size * c
    dim = weight.shape[0]
    tokens = num_patches + 1

    # --- XLA glue: einops rearrange 'b c (w p1)(h p2) -> b (w h)(p1 p2 c)'.
    #     The bf16 cast fuses into the transpose (halves the DMA bytes).
    patches = x.reshape(b, c, nh, patch_size, nw, patch_size)
    patches = jnp.transpose(patches, (0, 2, 4, 3, 5, 1))       # (b, nh, nw, p1, p2, c)
    patches = patches.reshape(b, num_patches, patch_dim_raw).astype(jnp.bfloat16)
    # TODO(synk): fuse the patch extraction into the kernel (block x as per-row
    #             patch strips) so the image is read from HBM exactly once.

    # Token tiling: 8-aligned, up to 512 rows per tile; grid = (b, token_tiles)
    # so a tile never straddles a batch boundary.
    tt = min(512, _round_up(tokens, 8))
    n_token_tiles = pl.cdiv(tokens, tt)
    tokens_pad = tt * n_token_tiles

    # K alignment keeps the MXU fully utilized (notably v5e); no-op when
    # patch_dim is already a multiple of 128.
    patch_dim = _round_up(patch_dim_raw, 128)

    # Single small pad on the bf16 patch matrix: prepend the zero cls-slot row,
    # round the token dim to the tile, and zero-pad K.  Fuses with the transpose.
    patches_tok = jnp.pad(
        patches,
        ((0, 0), (1, tokens_pad - tokens), (0, patch_dim - patch_dim_raw)))

    w_t = weight.T.astype(jnp.bfloat16)                        # (patch_dim_raw, dim)
    if patch_dim != patch_dim_raw:
        w_t = jnp.pad(w_t, ((0, patch_dim - patch_dim_raw), (0, 0)))

    # Positional table with the cls row folded in: row 0 = cls_token + pos[0].
    # Together with the zero dummy patch row this makes the kernel uniform.
    pos = pos_embedding.reshape(tokens, dim).astype(jnp.float32)
    cls = cls_token.reshape(1, dim).astype(jnp.float32)
    pos_table = jnp.concatenate([pos[:1] + cls, pos[1:]], axis=0)   # (tokens, dim)
    if tokens_pad != tokens:
        pos_table = jnp.pad(pos_table, ((0, tokens_pad - tokens), (0, 0)))

    grid = (b, n_token_tiles)
    out_shape = jax.ShapeDtypeStruct((b, tokens, dim), out_dtype)

    cost = pl.CostEstimate(
        flops=2 * b * tokens_pad * patch_dim * dim,
        transcendentals=0,
        bytes_accessed=int(patches_tok.size * 2 + w_t.size * 2
                           + pos_table.size * 4 + b * tokens * dim * 4),
    )

    # VMEM need: double-buffered patch/out tiles + (at most double-buffered)
    # resident weight and pos table.  Clamp to <= 64 MiB (v7x per-TC VMEM).
    vmem_est = (2 * tt * patch_dim * 2 + 2 * tt * dim * 4
                + 2 * patch_dim * dim * 2 + 2 * tokens_pad * dim * 4)
    vmem_limit = int(min(64 * 1024 * 1024, max(16 * 1024 * 1024, 2 * vmem_est)))

    kernel = functools.partial(_patch_embed_kernel, token_tile=tt)

    def run(single_buffer_consts):
        # Constant-index (VMEM-resident) operands never need a 2nd pipeline buffer.
        resident = (dict(pipeline_mode=pl.Buffered(1))
                    if single_buffer_consts else {})
        return pl.pallas_call(
            kernel,
            out_shape=out_shape,
            grid_spec=pltpu.PrefetchScalarGridSpec(
                num_scalar_prefetch=0,
                grid=grid,
                in_specs=[
                    # token-row tile of patch pixels (bf16), streamed
                    pl.BlockSpec((None, tt, patch_dim), lambda bi, ti: (bi, ti, 0)),
                    # transposed weight (bf16), VMEM-resident
                    pl.BlockSpec((patch_dim, dim), lambda bi, ti: (0, 0), **resident),
                    # positional table (f32), VMEM-resident
                    pl.BlockSpec((tokens_pad, dim), lambda bi, ti: (0, 0), **resident),
                ],
                out_specs=pl.BlockSpec((None, tt, dim), lambda bi, ti: (bi, ti, 0)),
            ),
            compiler_params=pltpu.CompilerParams(
                dimension_semantics=("parallel", "parallel"),   # megacore / v7x dual-TC
                vmem_limit_bytes=vmem_limit,
            ),
            cost_estimate=cost,
        )(patches_tok, w_t, pos_table)

    try:
        return run(True)
    except Exception:  # pragma: no cover — JAX versions without single-buffer support
        return run(False)


def _reference(x, weight, cls_token, pos_embedding, patch_size, matmul_dtype=jnp.float32):
    b, c, H, W = x.shape
    nh, nw = H // patch_size, W // patch_size
    patches = x.reshape(b, c, nh, patch_size, nw, patch_size)
    patches = jnp.transpose(patches, (0, 2, 4, 3, 5, 1)).reshape(b, nh * nw, -1)
    x1 = jnp.dot(patches.astype(matmul_dtype), weight.T.astype(matmul_dtype),
                 preferred_element_type=jnp.float32)
    cls = jnp.broadcast_to(cls_token, (b, 1, weight.shape[0]))
    x2 = jnp.concatenate([cls, x1], axis=1)
    return x2 + pos_embedding


if __name__ == "__main__":
    # Small shapes consistent with the module.
    batch, channel = 2, 4
    img = 16
    patch_size = 8
    dim = 128
    num_patches = (img // patch_size) * (img // patch_size)      # 4
    patch_dim = patch_size * patch_size * channel                # 256

    key = jax.random.PRNGKey(0)
    kx, kw, kc, kp = jax.random.split(key, 4)

    x = jax.random.normal(kx, (batch, channel, img, img), dtype=jnp.float32)
    # nn.Linear(patch_dim, dim, bias=False): weight shape (dim, patch_dim)
    weight = jax.random.normal(kw, (dim, patch_dim), dtype=jnp.float32) * (1.0 / patch_dim ** 0.5)
    cls_token = jax.random.normal(kc, (1, 1, dim), dtype=jnp.float32)
    pos_embedding = jax.random.normal(kp, (1, num_patches + 1, dim), dtype=jnp.float32)

    out = patch_embedding_forward(x, weight, cls_token, pos_embedding, patch_size)
    out = jax.block_until_ready(out)
    assert out.shape == (batch, num_patches + 1, dim), out.shape

    # Compare against a reference that uses the same bf16 MXU-operand precision.
    ref_bf16 = _reference(x, weight, cls_token, pos_embedding, patch_size,
                          matmul_dtype=jnp.bfloat16)
    assert jnp.allclose(out, ref_bf16, atol=2e-2, rtol=2e-2), "mismatch vs bf16 reference"

    # Loose sanity check against the full-f32 reference (bf16 operand quantization).
    ref_f32 = _reference(x, weight, cls_token, pos_embedding, patch_size)
    assert jnp.allclose(out, ref_f32, atol=8e-2, rtol=8e-2), "mismatch vs f32 reference"

    print("KERNEL_OK")
</pallas_src>

<mosaic_0001>
module attributes {stable_mosaic.version = 11 : i64} {
  func.func @_patch_embed_kernel(%arg0: i32, %arg1: i32, %arg2: memref<1x8x256xbf16, #tpu.memory_space<vmem>>, %arg3: memref<256x128xbf16, #tpu.memory_space<vmem>>, %arg4: memref<8x128xf32, #tpu.memory_space<vmem>>, %arg5: memref<1x8x128xf32, #tpu.memory_space<vmem>>) attributes {dimension_semantics = [#tpu.dimension_semantics<parallel>, #tpu.dimension_semantics<parallel>], iteration_bounds = array<i64: 2, 1>, scalar_prefetch = 0 : i64, scratch_operands = 0 : i64, tpu.core_type = #tpu.core_type<tc>, window_params = [{transform_indices = @transform_0, window_bounds = array<i64: 1, 8, 256>}, {pipeline_mode = #tpu.pipeline_mode<synchronous>, transform_indices = @transform_1, window_bounds = array<i64: 256, 128>}, {pipeline_mode = #tpu.pipeline_mode<synchronous>, transform_indices = @transform_2, window_bounds = array<i64: 8, 128>}, {transform_indices = @transform_3, window_bounds = array<i64: 1, 8, 128>}]} {
    %c0 = arith.constant 0 : index
    %c0_0 = arith.constant 0 : index
    %c0_1 = arith.constant 0 : index
    %0 = vector.load %arg2[%c0, %c0_0, %c0_1] : memref<1x8x256xbf16, #tpu.memory_space<vmem>>, vector<1x8x256xbf16>
    %1 = vector.shape_cast %0 : vector<1x8x256xbf16> to vector<8x256xbf16>
    %c0_2 = arith.constant 0 : index
    %c0_3 = arith.constant 0 : index
    %2 = vector.load %arg3[%c0_2, %c0_3] : memref<256x128xbf16, #tpu.memory_space<vmem>>, vector<256x128xbf16>
    %cst = arith.constant dense<0.000000e+00> : vector<8x128xf32>
    %3 = tpu.matmul %1, %2, %cst {dimension_numbers = #tpu.dot_dimension_numbers<[1], [0], [0], [1], [0, 0, 1, 1], [], []>} : vector<8x256xbf16>, vector<256x128xbf16>, vector<8x128xf32> -> vector<8x128xf32>
    %c8_i32 = arith.constant 8 : i32
    %4 = arith.muli %arg1, %c8_i32 : i32
    %5 = tpu.assume_multiple %4, 8 : i32
    %6 = arith.index_cast %5 : i32 to index
    %c0_4 = arith.constant 0 : index
    %7 = vector.load %arg4[%6, %c0_4] : memref<8x128xf32, #tpu.memory_space<vmem>>, vector<8x128xf32>
    %8 = arith.addf %3, %7 : vector<8x128xf32>
    %c0_5 = arith.constant 0 : index
    %c0_6 = arith.constant 0 : index
    %c0_7 = arith.constant 0 : index
    %9 = vector.load %arg5[%c0_5, %c0_6, %c0_7] : memref<1x8x128xf32, #tpu.memory_space<vmem>>, vector<1x8x128xf32>
    %10 = vector.shape_cast %9 : vector<1x8x128xf32> to vector<8x128xf32>
    %11 = vector.shape_cast %8 : vector<8x128xf32> to vector<1x8x128xf32>
    tpu.vector_store %arg5[%c0_5, %c0_6, %c0_7], %11 {strides = array<i32>} : memref<1x8x128xf32, #tpu.memory_space<vmem>>, vector<1x8x128xf32>,
    return
  }
  func.func @transform_0(%arg0: i32, %arg1: i32) -> (i32, i32, i32) {
    %c0_i32 = arith.constant 0 : i32
    %c0_i32_0 = arith.constant 0 : i32
    return %arg0, %arg1, %c0_i32 : i32, i32, i32
  }
  func.func @transform_1(%arg0: i32, %arg1: i32) -> (i32, i32) {
    %c0_i32 = arith.constant 0 : i32
    %c0_i32_0 = arith.constant 0 : i32
    %c0_i32_1 = arith.constant 0 : i32
    return %c0_i32, %c0_i32_0 : i32, i32
  }
  func.func @transform_2(%arg0: i32, %arg1: i32) -> (i32, i32) {
    %c0_i32 = arith.constant 0 : i32
    %c0_i32_0 = arith.constant 0 : i32
    %c0_i32_1 = arith.constant 0 : i32
    return %c0_i32, %c0_i32_0 : i32, i32
  }
  func.func @transform_3(%arg0: i32, %arg1: i32) -> (i32, i32, i32) {
    %c0_i32 = arith.constant 0 : i32
    %c0_i32_0 = arith.constant 0 : i32
    return %arg0, %arg1, %c0_i32 : i32, i32, i32
  }
}

module attributes {stable_mosaic.version = 11 : i64} {
  func.func @_patch_embed_kernel(%arg0: i32, %arg1: i32, %arg2: memref<1x8x256xbf16, #tpu.memory_space<vmem>>, %arg3: memref<256x128xbf16, #tpu.memory_space<vmem>>, %arg4: memref<8x128xf32, #tpu.memory_space<vmem>>, %arg5: memref<1x8x128xf32, #tpu.memory_space<vmem>>) attributes {dimension_semantics = [#tpu.dimension_semantics<parallel>, #tpu.dimension_semantics<parallel>], iteration_bounds = array<i64: 2, 1>, scalar_prefetch = 0 : i64, scratch_operands = 0 : i64, tpu.core_type = #tpu.core_type<tc>, window_params = [{transform_indices = @transform_0, window_bounds = array<i64: 1, 8, 256>}, {pipeline_mode = #tpu.pipeline_mode<synchronous>, transform_indices = @transform_1, window_bounds = array<i64: 256, 128>}, {pipeline_mode = #tpu.pipeline_mode<synchronous>, transform_indices = @transform_2, window_bounds = array<i64: 8, 128>}, {transform_indices = @transform_3, window_bounds = array<i64: 1, 8, 128>}]} {
    %c0 = arith.constant 0 : index
    %c0_0 = arith.constant 0 : index
    %c0_1 = arith.constant 0 : index
    %0 = vector.load %arg2[%c0, %c0_0, %c0_1] : memref<1x8x256xbf16, #tpu.memory_space<vmem>>, vector<1x8x256xbf16>
    %1 = vector.shape_cast %0 : vector<1x8x256xbf16> to vector<8x256xbf16>
    %c0_2 = arith.constant 0 : index
    %c0_3 = arith.constant 0 : index
    %2 = vector.load %arg3[%c0_2, %c0_3] : memref<256x128xbf16, #tpu.memory_space<vmem>>, vector<256x128xbf16>
    %cst = arith.constant dense<0.000000e+00> : vector<8x128xf32>
    %3 = tpu.matmul %1, %2, %cst {dimension_numbers = #tpu.dot_dimension_numbers<[1], [0], [0], [1], [0, 0, 1, 1], [], []>} : vector<8x256xbf16>, vector<256x128xbf16>, vector<8x128xf32> -> vector<8x128xf32>
    %c8_i32 = arith.constant 8 : i32
    %4 = arith.muli %arg1, %c8_i32 : i32
    %5 = tpu.assume_multiple %4, 8 : i32
    %6 = arith.index_cast %5 : i32 to index
    %c0_4 = arith.constant 0 : index
    %7 = vector.load %arg4[%6, %c0_4] : memref<8x128xf32, #tpu.memory_space<vmem>>, vector<8x128xf32>
    %8 = arith.addf %3, %7 : vector<8x128xf32>
    %c0_5 = arith.constant 0 : index
    %c0_6 = arith.constant 0 : index
    %c0_7 = arith.constant 0 : index
    %9 = vector.load %arg5[%c0_5, %c0_6, %c0_7] : memref<1x8x128xf32, #tpu.memory_space<vmem>>, vector<1x8x128xf32>
    %10 = vector.shape_cast %9 : vector<1x8x128xf32> to vector<8x128xf32>
    %11 = vector.shape_cast %8 : vector<8x128xf32> to vector<1x8x128xf32>
    tpu.vector_store %arg5[%c0_5, %c0_6, %c0_7], %11 {strides = array<i32>} : memref<1x8x128xf32, #tpu.memory_space<vmem>>, vector<1x8x128xf32>,
    return
  }
  func.func @transform_0(%arg0: i32, %arg1: i32) -> (i32, i32, i32) {
    %c0_i32 = arith.constant 0 : i32
    %c0_i32_0 = arith.constant 0 : i32
    return %arg0, %arg1, %c0_i32 : i32, i32, i32
  }
  func.func @transform_1(%arg0: i32, %arg1: i32) -> (i32, i32) {
    %c0_i32 = arith.constant 0 : i32
    %c0_i32_0 = arith.constant 0 : i32
    %c0_i32_1 = arith.constant 0 : i32
    return %c0_i32, %c0_i32_0 : i32, i32
  }
  func.func @transform_2(%arg0: i32, %arg1: i32) -> (i32, i32) {
    %c0_i32 = arith.constant 0 : i32
    %c0_i32_0 = arith.constant 0 : i32
    %c0_i32_1 = arith.constant 0 : i32
    return %c0_i32, %c0_i32_0 : i32, i32
  }
  func.func @transform_3(%arg0: i32, %arg1: i32) -> (i32, i32, i32) {
    %c0_i32 = arith.constant 0 : i32
    %c0_i32_0 = arith.constant 0 : i32
    return %arg0, %arg1, %c0_i32 : i32, i32, i32
  }
}

</mosaic_0001>

<llo_original>
// kernel: tpu_custom_call.1
$region0: #{tpu_custom_call.1}
  #allocation0 [shape = 'u32[]', space=smem, size = 0x4, offset = 0x4, fixed_abs, tag = 'smem constant byte address 0x4 - core index']
  #allocation1 [shape = 'u32[144,128]{1,0:T(1,128)}', space=vmem, size = 0x12000, scoped, tag = 'internal scratch']
  %s0 = inlined_call_operand.hbm [shape: bf16[2,8,256], index: 0, kind: input, shape index: {}]
  %s1 = inlined_call_operand.hbm [shape: bf16[256,128], index: 1, kind: input, shape index: {}]
  %s2 = inlined_call_operand.hbm [shape: f32[8,128], index: 2, kind: input, shape index: {}]
  %s3 = inlined_call_operand.vmem [shape: f32[2,5,128], index: 3, kind: output, shape index: {}]
  %s4 = sld [smem:[#allocation0]]
  $region57: #{tpu_custom_call.1} parent=0
    _
  %s6 = ssub.s32 1, %s4
  %s7 = scalar_select 0, %s6, %s4
  $region1: #{tpu_custom_call.1} parent=0
    #allocation2 [shape = 'u8[8192]{0}', space=vmem, size = 0x2000, scoped, tag = 'input window, operand 0']
    #allocation3 [shape = 's32[2]{0}', space=sflag, size = 0x8, scoped, tag = 'scoped memory for tpu_custom_call.1']
    #allocation4 [shape = 'u8[65536]{0}', space=vmem, size = 0x10000, scoped, tag = 'input window, operand 1, single buffered']
    #allocation5 [shape = 's32[1]{0}', space=sflag, size = 0x4, scoped, tag = 'scoped memory for tpu_custom_call.1']
    #allocation6 [shape = 'u8[4096]{0}', space=vmem, size = 0x1000, scoped, tag = 'input window, operand 2, single buffered']
    %8 = vsyncpa [#allocation3], 0
    %s9 = scalar_lea.sflag [#allocation3], 1
    %10 = vsyncpa %s9, 0
    %11 = vsyncpa [#allocation5], 0
    loop: start=0, step=1, limit=4
    $region2: #{tpu_custom_call.1} parent=1 // loop_pre_header
      _
    $region3: #{tpu_custom_call.1} parent=1 // loop_header
      %s13 = sphi 0, %s17
      %p14 = scmp.ge.s32.totalorder %s13, 4
      %s20 = sphi 0, %s32
      %s21 = sphi 0, %s28
      %s22 = sphi 0, %s20
      %s23 = sphi 0, %s21
      %s24 = sphi 0, %s22
      %s25 = sphi 0, %s23
      %s37 = sphi 0, %s39
      %s40 = sphi 0, %s37
      %s41 = sphi 0, %s40
      %s57 = sphi 0, %s41
      %s61 = sphi 0, %s61
      %s63 = sphi 0, %s61
      %s64 = sphi 0, %s63
      %s78 = sphi 0, %s64
      %s82 = sphi 0, %s82
      %s84 = sphi 0, %s82
      %s85 = sphi 0, %s84
      %s99 = sphi 0, %s85
      %s107 = sphi 0, %s109
      %s110 = sphi 0, %s107
      %s111 = sphi 0, %s110
      %s127 = sphi 0, %s111
    $region4: #{tpu_custom_call.1} parent=1 // loop_header_branch
      %16 = sbr.rel (%p14) target = $region8
    $region5: #{tpu_custom_call.1} parent=1 // loop_body
      %s18 = ssub.s32 %s13, 1
      %s19 = ssub.s32 %s13, 2
      %s26 = sadd.s32 1, %s21
      %p27 = scmp.ge.s32.totalorder %s26, 1
      %s28 = scalar_select %p27, 0, %s26
      %s29 = sadd.s32 1, %s20
      %s30 = scalar_select %p27, %s29, %s20
      %p31 = scmp.ge.s32.totalorder %s30, 2
      %s32 = scalar_select %p31, 0, %s30
      %s33 = ssub.s32 %s20, %s32
      %s34 = ssub.s32 %s21, %s28
      %s35 = sor.u32 %s33, %s34
      %p36 = scmp.eq.s32.totalorder %s35, 0
      %s38 = sadd.s32 %s37, 1
      %s39 = scalar_select %p36, %s37, %s38
      %p42 = pneg %p36
      %p43 = scmp.eq.s32.totalorder %s13, 1
      %p44 = por %p42, %p43
      %p45 = scmp.ne.s32.totalorder %s37, %s40
      %p46 = scmp.eq.s32.totalorder %s13, 0
      %p47 = por %p45, %p46
      %p48 = scmp.ne.s32.totalorder %s37, %s40
      %p49 = scmp.eq.s32.totalorder %s18, 1
      %p50 = por %p48, %p49
      %p51 = scmp.ne.s32.totalorder %s40, %s41
      %p52 = scmp.eq.s32.totalorder %s18, 0
      %p53 = por %p51, %p52
      %p54 = scmp.ne.s32.totalorder %s40, %s41
      %p55 = scmp.eq.s32.totalorder %s19, 1
      %p56 = por %p54, %p55
      %p58 = scmp.ne.s32.totalorder %s41, %s57
      %p59 = scmp.eq.s32.totalorder %s19, 0
      %p60 = por %p58, %p59
      %s62 = sadd.s32 %s61, 1
      %p65 = scmp.eq.s32.totalorder %s13, 1
      %p66 = scmp.ne.s32.totalorder %s61, %s63
      %p67 = scmp.eq.s32.totalorder %s13, 0
      %p68 = por %p66, %p67
      %p69 = scmp.ne.s32.totalorder %s61, %s63
      %p70 = scmp.eq.s32.totalorder %s18, 1
      %p71 = por %p69, %p70
      %p72 = scmp.ne.s32.totalorder %s63, %s64
      %p73 = scmp.eq.s32.totalorder %s18, 0
      %p74 = por %p72, %p73
      %p75 = scmp.ne.s32.totalorder %s63, %s64
      %p76 = scmp.eq.s32.totalorder %s19, 1
      %p77 = por %p75, %p76
      %p79 = scmp.ne.s32.totalorder %s64, %s78
      %p80 = scmp.eq.s32.totalorder %s19, 0
      %p81 = por %p79, %p80
      %s83 = sadd.s32 %s82, 1
      %p86 = scmp.eq.s32.totalorder %s13, 1
      %p87 = scmp.ne.s32.totalorder %s82, %s84
      %p88 = scmp.eq.s32.totalorder %s13, 0
      %p89 = por %p87, %p88
      %p90 = scmp.ne.s32.totalorder %s82, %s84
      %p91 = scmp.eq.s32.totalorder %s18, 1
      %p92 = por %p90, %p91
      %p93 = scmp.ne.s32.totalorder %s84, %s85
      %p94 = scmp.eq.s32.totalorder %s18, 0
      %p95 = por %p93, %p94
      %p96 = scmp.ne.s32.totalorder %s84, %s85
      %p97 = scmp.eq.s32.totalorder %s19, 1
      %p98 = por %p96, %p97
      %p100 = scmp.ne.s32.totalorder %s85, %s99
      %p101 = scmp.eq.s32.totalorder %s19, 0
      %p102 = por %p100, %p101
      %s103 = ssub.s32 %s20, %s32
      %s104 = ssub.s32 %s21, %s28
      %s105 = sor.u32 %s103, %s104
      %p106 = scmp.eq.s32.totalorder %s105, 0
      %s108 = sadd.s32 %s107, 1
      %s109 = scalar_select %p106, %s107, %s108
      %p112 = pneg %p106
      %p113 = scmp.eq.s32.totalorder %s13, 1
      %p114 = por %p112, %p113
      %p115 = scmp.ne.s32.totalorder %s107, %s110
      %p116 = scmp.eq.s32.totalorder %s13, 0
      %p117 = por %p115, %p116
      %p118 = scmp.ne.s32.totalorder %s107, %s110
      %p119 = scmp.eq.s32.totalorder %s18, 1
      %p120 = por %p118, %p119
      %p121 = scmp.ne.s32.totalorder %s110, %s111
      %p122 = scmp.eq.s32.totalorder %s18, 0
      %p123 = por %p121, %p122
      %p124 = scmp.ne.s32.totalorder %s110, %s111
      %p125 = scmp.eq.s32.totalorder %s19, 1
      %p126 = por %p124, %p125
      %p128 = scmp.ne.s32.totalorder %s111, %s127
      %p129 = scmp.eq.s32.totalorder %s19, 0
      %p130 = por %p128, %p129
      %p131 = scmp.le.s32.totalorder 1, %s13
      %p132 = scmp.lt.s32.totalorder %s13, 3
      %p133 = pnand %p131, %p132
      %p134 = pneg %p133
      // Predicated region
      $region9: #{tpu_custom_call.1} parent=5 // pred_check
        _
      $region10: #{tpu_custom_call.1} parent=5 // pred_check_branch
        %136 = sbr.rel (%p133) target = $region12
      $region11: #{tpu_custom_call.1} parent=5 // pred_region
        %s137 = ssub.s32 %s13, 1
        // Predicated region
        $region13: #{tpu_custom_call.1} parent=11 // pred_check
          %p138 = pneg %p74
        $region14: #{tpu_custom_call.1} parent=11 // pred_check_branch
          %140 = sbr.rel (%p138) target = $region16
        $region15: #{tpu_custom_call.1} parent=11 // pred_region
          %s142 = ssub.s32 2048, 2048
          %143 = vsyncadd [#allocation5], %s142
          %s144 = sshll.u32 [#allocation4], 4
          %s145 = int_to_ptr.vmem [resolvable:$true] %s144
          %150 = dma.hbm_to_vmem [thread:$0]  %s1, 2048, %s145, [#allocation5], 64, 64, 4
        $region16: #{tpu_custom_call.1} parent=11 // pred_fallthru
          _
        // Predicated region
        $region17: #{tpu_custom_call.1} parent=11 // pred_check
          %p151 = pneg %p95
        $region18: #{tpu_custom_call.1} parent=11 // pred_check_branch
          %153 = sbr.rel (%p151) target = $region20
        $region19: #{tpu_custom_call.1} parent=11 // pred_region
          %s155 = ssub.s32 128, 128
          %156 = vsyncadd [#allocation5], %s155
          %s158 = sshll.u32 [#allocation6], 4
          %s159 = int_to_ptr.vmem [resolvable:$true] %s158
          %161 = dma.hbm_to_vmem [thread:$0]  %s2, 128, %s159, [#allocation5]
        $region20: #{tpu_custom_call.1} parent=11 // pred_fallthru
          _
      $region12: #{tpu_custom_call.1} parent=5 // pred_fallthru
        _
      %p162 = scmp.lt.s32.totalorder %s13, 2
      // Predicated region
      $region21: #{tpu_custom_call.1} parent=5 // pred_check
        %p163 = pneg %p162
      $region22: #{tpu_custom_call.1} parent=5 // pred_check_branch
        %165 = sbr.rel (%p163) target = $region24
      $region23: #{tpu_custom_call.1} parent=5 // pred_region
        // Predicated region
        $region25: #{tpu_custom_call.1} parent=23 // pred_check
          %p166 = pneg %p47
        $region26: #{tpu_custom_call.1} parent=23 // pred_check_branch
          %168 = sbr.rel (%p166) target = $region28
        $region27: #{tpu_custom_call.1} parent=23 // pred_region
          %s169 = sand.u32 %s37, 1
          %s170 = scalar_lea.sflag [#allocation3], %s169
          %s171 = sand.u32 %s37, 1
          %s172 = smul.addr %s171, 8
          %s173 = scalar_lea.vmem [#allocation2], %s172
          %s175 = ssub.s32 128, 128
          %176 = vsyncadd %s170, %s175
          %s177 = smul.addr %s21, 2
          %s178 = smul.addr %s20, 2
          %s179 = sadd.s32 %s177, %s178
          %s180 = smul.addr %s179, 64
          %s181 = scalar_lea.hbm %s0, %s180
          %s183 = sshll.u32 %s173, 4
          %s184 = int_to_ptr.vmem [resolvable:$true] %s183
          %186 = dma.hbm_to_vmem [thread:$0]  %s181, 128, %s184, %s170
        $region28: #{tpu_custom_call.1} parent=23 // pred_fallthru
          _
      $region24: #{tpu_custom_call.1} parent=5 // pred_fallthru
        _
      %p187 = scmp.le.s32.totalorder 1, %s13
      %p188 = scmp.lt.s32.totalorder %s13, 3
      %p189 = pnand %p187, %p188
      %p190 = pneg %p189
      // Predicated region
      $region29: #{tpu_custom_call.1} parent=5 // pred_check
        _
      $region30: #{tpu_custom_call.1} parent=5 // pred_check_branch
        %192 = sbr.rel (%p189) target = $region32
      $region31: #{tpu_custom_call.1} parent=5 // pred_region
        %s193 = ssub.s32 %s13, 1
        %s194 = sand.u32 %s40, 1
        %s195 = scalar_lea.sflag [#allocation3], %s194
        %s196 = sand.u32 %s40, 1
        %s197 = smul.addr %s196, 8
        %s198 = scalar_lea.vmem [#allocation2], %s197
        // Predicated region
        $region33: #{tpu_custom_call.1} parent=31 // pred_check
          %p199 = pneg %p53
        $region34: #{tpu_custom_call.1} parent=31 // pred_check_branch
          %201 = sbr.rel (%p199) target = $region36
        $region35: #{tpu_custom_call.1} parent=31 // pred_region
          %202 = dma.done %s195, 128
        $region36: #{tpu_custom_call.1} parent=31 // pred_fallthru
          _
        // Predicated region
        $region37: #{tpu_custom_call.1} parent=31 // pred_check
          %p203 = pneg %p74
        $region38: #{tpu_custom_call.1} parent=31 // pred_check_branch
          %205 = sbr.rel (%p203) target = $region40
        $region39: #{tpu_custom_call.1} parent=31 // pred_region
          %206 = dma.done [#allocation5], 2048
        $region40: #{tpu_custom_call.1} parent=31 // pred_fallthru
          _
        // Predicated region
        $region41: #{tpu_custom_call.1} parent=31 // pred_check
          %p207 = pneg %p95
        $region42: #{tpu_custom_call.1} parent=31 // pred_check_branch
          %209 = sbr.rel (%p207) target = $region44
        $region43: #{tpu_custom_call.1} parent=31 // pred_region
          %210 = dma.done [#allocation5], 128
        $region44: #{tpu_custom_call.1} parent=31 // pred_fallthru
          _
        %s211 = sand.u32 %s40, 1
        %s212 = scalar_lea.sflag [#allocation3], %s211
        %s213 = sand.u32 %s40, 1
        %s214 = smul.addr %s213, 8
        %s215 = scalar_lea.vmem [#allocation2], %s214
        %p216 = pneg %p53
        %p217 = pneg %p50
        %p218 = pneg %p74
        %p219 = pneg %p71
        %p220 = pneg %p95
        %p221 = pneg %p92
        %p222 = pneg %p123
        %p223 = pneg %p120
        %p224 = scmp.lt.s32.totalorder %s22, 1
        %s225 = scalar_select %p224, %s22, 1
        %p226 = scmp.lt.s32.totalorder %s23, 0
        %s227 = scalar_select %p226, %s23, 0
        %s228 = sadd.s32 %s227, %s225
        %s229 = smul.addr %s228, 8
        %s230 = scalar_lea.vmem %s3, %s229
        %p231 = scmp.lt.s32.totalorder %s22, 1
        %s232 = scalar_select %p231, %s22, 1
        %p233 = scmp.lt.s32.totalorder %s23, 0
        %s234 = scalar_select %p233, %s23, 0
        %s235 = sadd.s32 %s234, %s232
        %s236 = smul.addr %s235, 8
        %s237 = scalar_lea.vmem %s3, %s236
        %v239 = vld [vmem:[%s198] sm:$0xff]
        %v240 = vld [vmem:[#allocation4] sm:$0xf]
        %v241 = vld [vmem:[#allocation4 + $0x4] sm:$0xf]
        %v242 = vld [vmem:[#allocation4 + $0x8] sm:$0xf]
        %v243 = vld [vmem:[#allocation4 + $0xc] sm:$0xf]
        %v244 = vld [vmem:[#allocation4 + $0x10] sm:$0xf]
        %v245 = vld [vmem:[#allocation4 + $0x14] sm:$0xf]
        %v246 = vld [vmem:[#allocation4 + $0x18] sm:$0xf]
        %v247 = vld [vmem:[#allocation4 + $0x1c] sm:$0xf]
        %v248 = vld [vmem:[#allocation4 + $0x20] sm:$0xf]
        %v249 = vld [vmem:[#allocation4 + $0x24] sm:$0xf]
        %v250 = vld [vmem:[#allocation4 + $0x28] sm:$0xf]
        %v251 = vld [vmem:[#allocation4 + $0x2c] sm:$0xf]
        %v252 = vld [vmem:[#allocation4 + $0x30] sm:$0xf]
        %v253 = vld [vmem:[#allocation4 + $0x34] sm:$0xf]
        %v254 = vld [vmem:[#allocation4 + $0x38] sm:$0xf]
        %v255 = vld [vmem:[#allocation4 + $0x3c] sm:$0xf]
        %v256 = vld [vmem:[#allocation4 + $0x40] sm:$0xf]
        %v257 = vld [vmem:[#allocation4 + $0x44] sm:$0xf]
        %v258 = vld [vmem:[#allocation4 + $0x48] sm:$0xf]
        %v259 = vld [vmem:[#allocation4 + $0x4c] sm:$0xf]
        %v260 = vld [vmem:[#allocation4 + $0x50] sm:$0xf]
        %v261 = vld [vmem:[#allocation4 + $0x54] sm:$0xf]
        %v262 = vld [vmem:[#allocation4 + $0x58] sm:$0xf]
        %v263 = vld [vmem:[#allocation4 + $0x5c] sm:$0xf]
        %v264 = vld [vmem:[#allocation4 + $0x60] sm:$0xf]
        %v265 = vld [vmem:[#allocation4 + $0x64] sm:$0xf]
        %v266 = vld [vmem:[#allocation4 + $0x68] sm:$0xf]
        %v267 = vld [vmem:[#allocation4 + $0x6c] sm:$0xf]
        %v268 = vld [vmem:[#allocation4 + $0x70] sm:$0xf]
        %v269 = vld [vmem:[#allocation4 + $0x74] sm:$0xf]
        %v270 = vld [vmem:[#allocation4 + $0x78] sm:$0xf]
        %v271 = vld [vmem:[#allocation4 + $0x7c] sm:$0xf]
        %s272 = smul.u32 %s23, 8
        %s273 = scalar_lea.vmem [#allocation6], %s272
        %v274 = vld [vmem:[%s273] sm:$0xff]
        %v276 = vunpack.c.l.b16 %v239
        %v277 = vunpack.c.h.b16 %v239
        %v278 = vpack.c.b16 %v276, %v276
        %v279 = vpack.c.b16 %v277, %v277
        %v314 = vunpack.c.l.b16 %v240
        %v315 = vunpack.c.l.b16 %v241
        %v316 = vunpack.c.l.b16 %v242
        %v317 = vunpack.c.l.b16 %v243
        %v318 = vunpack.c.l.b16 %v244
        %v319 = vunpack.c.l.b16 %v245
        %v320 = vunpack.c.l.b16 %v246
        %v321 = vunpack.c.l.b16 %v247
        %v322 = vunpack.c.l.b16 %v248
        %v323 = vunpack.c.l.b16 %v249
        %v324 = vunpack.c.l.b16 %v250
        %v325 = vunpack.c.l.b16 %v251
        %v326 = vunpack.c.l.b16 %v252
        %v327 = vunpack.c.l.b16 %v253
        %v328 = vunpack.c.l.b16 %v254
        %v329 = vunpack.c.l.b16 %v255
        %v330 = vunpack.c.l.b16 %v256
        %v331 = vunpack.c.l.b16 %v257
        %v332 = vunpack.c.l.b16 %v258
        %v333 = vunpack.c.l.b16 %v259
        %v334 = vunpack.c.l.b16 %v260
        %v335 = vunpack.c.l.b16 %v261
        %v336 = vunpack.c.l.b16 %v262
        %v337 = vunpack.c.l.b16 %v263
        %v338 = vunpack.c.l.b16 %v264
        %v339 = vunpack.c.l.b16 %v265
        %v340 = vunpack.c.l.b16 %v266
        %v341 = vunpack.c.l.b16 %v267
        %v342 = vunpack.c.l.b16 %v268
        %v343 = vunpack.c.l.b16 %v269
        %v344 = vunpack.c.l.b16 %v270
        %v345 = vunpack.c.l.b16 %v271
        %v346 = vpack.c.b16 %v315, %v314
        %v347 = vpack.c.b16 %v317, %v316
        %v348 = vpack.c.b16 %v319, %v318
        %v349 = vpack.c.b16 %v321, %v320
        %v350 = vpack.c.b16 %v323, %v322
        %v351 = vpack.c.b16 %v325, %v324
        %v352 = vpack.c.b16 %v327, %v326
        %v353 = vpack.c.b16 %v329, %v328
        %v354 = vpack.c.b16 %v331, %v330
        %v355 = vpack.c.b16 %v333, %v332
        %v356 = vpack.c.b16 %v335, %v334
        %v357 = vpack.c.b16 %v337, %v336
        %v358 = vpack.c.b16 %v339, %v338
        %v359 = vpack.c.b16 %v341, %v340
        %v360 = vpack.c.b16 %v343, %v342
        %v361 = vpack.c.b16 %v345, %v344
        %378 = vmatprep.subr.bf16.mxu0 0
        %379 = vmatpush1.bf16.msra.mxu0 %v346
        %380 = vmatprep.subr.bf16.mxu0 0
        %381 = vmatpush1.bf16.msra.mxu0 %v347
        %382 = vmatprep.subr.bf16.mxu0 0
        %383 = vmatpush1.bf16.msra.mxu0 %v348
        %384 = vmatprep.subr.bf16.mxu0 0
        %385 = vmatpush1.bf16.msra.mxu0 %v349
        %386 = vmatprep.subr.bf16.mxu0 0
        %387 = vmatpush1.bf16.msra.mxu0 %v350
        %388 = vmatprep.subr.bf16.mxu0 0
        %389 = vmatpush1.bf16.msra.mxu0 %v351
        %390 = vmatprep.subr.bf16.mxu0 0
        %391 = vmatpush1.bf16.msra.mxu0 %v352
        %392 = vmatprep.subr.bf16.mxu0 0
        %393 = vmatpush1.bf16.msra.mxu0 %v353
        %394 = vmatprep.subr.bf16.mxu0 0
        %395 = vmatpush1.bf16.msra.mxu0 %v354
        %396 = vmatprep.subr.bf16.mxu0 0
        %397 = vmatpush1.bf16.msra.mxu0 %v355
        %398 = vmatprep.subr.bf16.mxu0 0
        %399 = vmatpush1.bf16.msra.mxu0 %v356
        %400 = vmatprep.subr.bf16.mxu0 0
        %401 = vmatpush1.bf16.msra.mxu0 %v357
        %402 = vmatprep.subr.bf16.mxu0 0
        %403 = vmatpush1.bf16.msra.mxu0 %v358
        %404 = vmatprep.subr.bf16.mxu0 0
        %405 = vmatpush1.bf16.msra.mxu0 %v359
        %406 = vmatprep.subr.bf16.mxu0 0
        %407 = vmatpush1.bf16.msra.mxu0 %v360
        %408 = vmatprep.subr.bf16.mxu0 0
        %409 = vmatpush1.bf16.msra.mxu0 %v361
        %410 = vmatprep.mubr.bf16.mxu0 %v279
        %411 = vmatmul.mubr.bf16.gmra.mrb[0].mxu0 %v278
        %v412 = vpop.f32.mrb[0].mxu0
        %v413 = vadd.f32 %v274, %v412
        %v414 = vpop.f32.mrb[0].mxu0
        %v415 = vpop.f32.mrb[0].mxu0
        %v416 = vpop.f32.mrb[0].mxu0
        %417 = vdwg.mxu0
        %418 = vst [vmem:[%s237] sm:$0xff] %v413
        %p419 = scmp.lt.s32.totalorder %s22, 1
        %s420 = scalar_select %p419, %s22, 1
        %p421 = scmp.lt.s32.totalorder %s23, 0
        %s422 = scalar_select %p421, %s23, 0
        %s423 = sadd.s32 %s422, %s420
        %s424 = smul.addr %s423, 8
        %s425 = scalar_lea.vmem %s3, %s424
        // Predicated region
        $region45: #{tpu_custom_call.1} parent=31 // pred_check
          %p426 = pneg %p120
        $region46: #{tpu_custom_call.1} parent=31 // pred_check_branch
          %428 = sbr.rel (%p426) target = $region48
        $region47: #{tpu_custom_call.1} parent=31 // pred_region
          _
        $region48: #{tpu_custom_call.1} parent=31 // pred_fallthru
          _
      $region32: #{tpu_custom_call.1} parent=5 // pred_fallthru
        _
      %p429 = scmp.le.s32.totalorder 2, %s13
      // Predicated region
      $region49: #{tpu_custom_call.1} parent=5 // pred_check
        %p430 = pneg %p429
      $region50: #{tpu_custom_call.1} parent=5 // pred_check_branch
        %432 = sbr.rel (%p430) target = $region52
      $region51: #{tpu_custom_call.1} parent=5 // pred_region
        %s433 = ssub.s32 %s13, 2
        // Predicated region
        $region53: #{tpu_custom_call.1} parent=51 // pred_check
          %p434 = pneg %p126
        $region54: #{tpu_custom_call.1} parent=51 // pred_check_branch
          %436 = sbr.rel (%p434) target = $region56
        $region55: #{tpu_custom_call.1} parent=51 // pred_region
          %p437 = scmp.lt.s32.totalorder %s24, 1
          %s438 = scalar_select %p437, %s24, 1
          %p439 = scmp.lt.s32.totalorder %s25, 0
          %s440 = scalar_select %p439, %s25, 0
          %s441 = sadd.s32 %s440, %s438
          %s442 = smul.addr %s441, 8
          %s443 = scalar_lea.vmem %s3, %s442
        $region56: #{tpu_custom_call.1} parent=51 // pred_fallthru
          _
      $region52: #{tpu_custom_call.1} parent=5 // pred_fallthru
        _
    $region6: #{tpu_custom_call.1} parent=1 // loop_footer
      %s17 = sadd.s32 1, %s13
    $region7: #{tpu_custom_call.1} parent=1 // loop_footer_branch
      %12 = sbr.rel target = $region3
    $region8: #{tpu_custom_call.1} parent=1 // loop_exit
      _
    %444 = vsyncpa [#allocation3], 1
    %s445 = scalar_lea.sflag [#allocation3], 1
    %446 = vsyncpa %s445, 1
    %447 = vsyncpa [#allocation5], 1

// kernel: tpu_custom_call.1
$region0: #{tpu_custom_call.1}
  #allocation0 [shape = 'u32[]', space=smem, size = 0x4, offset = 0x4, fixed_abs, tag = 'smem constant byte address 0x4 - core index']
  #allocation1 [shape = 'u32[144,128]{1,0:T(1,128)}', space=vmem, size = 0x12000, scoped, tag = 'internal scratch']
  %s0 = inlined_call_operand.hbm [shape: bf16[2,8,256], index: 0, kind: input, shape index: {}]
  %s1 = inlined_call_operand.hbm [shape: bf16[256,128], index: 1, kind: input, shape index: {}]
  %s2 = inlined_call_operand.hbm [shape: f32[8,128], index: 2, kind: input, shape index: {}]
  %s3 = inlined_call_operand.vmem [shape: f32[2,5,128], index: 3, kind: output, shape index: {}]
  %s4 = sld [smem:[#allocation0]]
  $region57: #{tpu_custom_call.1} parent=0
    _
  %s6 = ssub.s32 1, %s4
  %s7 = scalar_select 0, %s6, %s4
  $region1: #{tpu_custom_call.1} parent=0
    #allocation2 [shape = 'u8[8192]{0}', space=vmem, size = 0x2000, scoped, tag = 'input window, operand 0']
    #allocation3 [shape = 's32[2]{0}', space=sflag, size = 0x8, scoped, tag = 'scoped memory for tpu_custom_call.1']
    #allocation4 [shape = 'u8[65536]{0}', space=vmem, size = 0x10000, scoped, tag = 'input window, operand 1, single buffered']
    #allocation5 [shape = 's32[1]{0}', space=sflag, size = 0x4, scoped, tag = 'scoped memory for tpu_custom_call.1']
    #allocation6 [shape = 'u8[4096]{0}', space=vmem, size = 0x1000, scoped, tag = 'input window, operand 2, single buffered']
    %8 = vsyncpa [#allocation3], 0
    %s9 = scalar_lea.sflag [#allocation3], 1
    %10 = vsyncpa %s9, 0
    %11 = vsyncpa [#allocation5], 0
    loop: start=0, step=1, limit=4
    $region2: #{tpu_custom_call.1} parent=1 // loop_pre_header
      _
    $region3: #{tpu_custom_call.1} parent=1 // loop_header
      %s13 = sphi 0, %s17
      %p14 = scmp.ge.s32.totalorder %s13, 4
      %s20 = sphi 0, %s32
      %s21 = sphi 0, %s28
      %s22 = sphi 0, %s20
      %s23 = sphi 0, %s21
      %s24 = sphi 0, %s22
      %s25 = sphi 0, %s23
      %s37 = sphi 0, %s39
      %s40 = sphi 0, %s37
      %s41 = sphi 0, %s40
      %s57 = sphi 0, %s41
      %s61 = sphi 0, %s61
      %s63 = sphi 0, %s61
      %s64 = sphi 0, %s63
      %s78 = sphi 0, %s64
      %s82 = sphi 0, %s82
      %s84 = sphi 0, %s82
      %s85 = sphi 0, %s84
      %s99 = sphi 0, %s85
      %s107 = sphi 0, %s109
      %s110 = sphi 0, %s107
      %s111 = sphi 0, %s110
      %s127 = sphi 0, %s111
    $region4: #{tpu_custom_call.1} parent=1 // loop_header_branch
      %16 = sbr.rel (%p14) target = $region8
    $region5: #{tpu_custom_call.1} parent=1 // loop_body
      %s18 = ssub.s32 %s13, 1
      %s19 = ssub.s32 %s13, 2
      %s26 = sadd.s32 1, %s21
      %p27 = scmp.ge.s32.totalorder %s26, 1
      %s28 = scalar_select %p27, 0, %s26
      %s29 = sadd.s32 1, %s20
      %s30 = scalar_select %p27, %s29, %s20
      %p31 = scmp.ge.s32.totalorder %s30, 2
      %s32 = scalar_select %p31, 0, %s30
      %s33 = ssub.s32 %s20, %s32
      %s34 = ssub.s32 %s21, %s28
      %s35 = sor.u32 %s33, %s34
      %p36 = scmp.eq.s32.totalorder %s35, 0
      %s38 = sadd.s32 %s37, 1
      %s39 = scalar_select %p36, %s37, %s38
      %p42 = pneg %p36
      %p43 = scmp.eq.s32.totalorder %s13, 1
      %p44 = por %p42, %p43
      %p45 = scmp.ne.s32.totalorder %s37, %s40
      %p46 = scmp.eq.s32.totalorder %s13, 0
      %p47 = por %p45, %p46
      %p48 = scmp.ne.s32.totalorder %s37, %s40
      %p49 = scmp.eq.s32.totalorder %s18, 1
      %p50 = por %p48, %p49
      %p51 = scmp.ne.s32.totalorder %s40, %s41
      %p52 = scmp.eq.s32.totalorder %s18, 0
      %p53 = por %p51, %p52
      %p54 = scmp.ne.s32.totalorder %s40, %s41
      %p55 = scmp.eq.s32.totalorder %s19, 1
      %p56 = por %p54, %p55
      %p58 = scmp.ne.s32.totalorder %s41, %s57
      %p59 = scmp.eq.s32.totalorder %s19, 0
      %p60 = por %p58, %p59
      %s62 = sadd.s32 %s61, 1
      %p65 = scmp.eq.s32.totalorder %s13, 1
      %p66 = scmp.ne.s32.totalorder %s61, %s63
      %p67 = scmp.eq.s32.totalorder %s13, 0
      %p68 = por %p66, %p67
      %p69 = scmp.ne.s32.totalorder %s61, %s63
      %p70 = scmp.eq.s32.totalorder %s18, 1
      %p71 = por %p69, %p70
      %p72 = scmp.ne.s32.totalorder %s63, %s64
      %p73 = scmp.eq.s32.totalorder %s18, 0
      %p74 = por %p72, %p73
      %p75 = scmp.ne.s32.totalorder %s63, %s64
      %p76 = scmp.eq.s32.totalorder %s19, 1
      %p77 = por %p75, %p76
      %p79 = scmp.ne.s32.totalorder %s64, %s78
      %p80 = scmp.eq.s32.totalorder %s19, 0
      %p81 = por %p79, %p80
      %s83 = sadd.s32 %s82, 1
      %p86 = scmp.eq.s32.totalorder %s13, 1
      %p87 = scmp.ne.s32.totalorder %s82, %s84
      %p88 = scmp.eq.s32.totalorder %s13, 0
      %p89 = por %p87, %p88
      %p90 = scmp.ne.s32.totalorder %s82, %s84
      %p91 = scmp.eq.s32.totalorder %s18, 1
      %p92 = por %p90, %p91
      %p93 = scmp.ne.s32.totalorder %s84, %s85
      %p94 = scmp.eq.s32.totalorder %s18, 0
      %p95 = por %p93, %p94
      %p96 = scmp.ne.s32.totalorder %s84, %s85
      %p97 = scmp.eq.s32.totalorder %s19, 1
      %p98 = por %p96, %p97
      %p100 = scmp.ne.s32.totalorder %s85, %s99
      %p101 = scmp.eq.s32.totalorder %s19, 0
      %p102 = por %p100, %p101
      %s103 = ssub.s32 %s20, %s32
      %s104 = ssub.s32 %s21, %s28
      %s105 = sor.u32 %s103, %s104
      %p106 = scmp.eq.s32.totalorder %s105, 0
      %s108 = sadd.s32 %s107, 1
      %s109 = scalar_select %p106, %s107, %s108
      %p112 = pneg %p106
      %p113 = scmp.eq.s32.totalorder %s13, 1
      %p114 = por %p112, %p113
      %p115 = scmp.ne.s32.totalorder %s107, %s110
      %p116 = scmp.eq.s32.totalorder %s13, 0
      %p117 = por %p115, %p116
      %p118 = scmp.ne.s32.totalorder %s107, %s110
      %p119 = scmp.eq.s32.totalorder %s18, 1
      %p120 = por %p118, %p119
      %p121 = scmp.ne.s32.totalorder %s110, %s111
      %p122 = scmp.eq.s32.totalorder %s18, 0
      %p123 = por %p121, %p122
      %p124 = scmp.ne.s32.totalorder %s110, %s111
      %p125 = scmp.eq.s32.totalorder %s19, 1
      %p126 = por %p124, %p125
      %p128 = scmp.ne.s32.totalorder %s111, %s127
      %p129 = scmp.eq.s32.totalorder %s19, 0
      %p130 = por %p128, %p129
      %p131 = scmp.le.s32.totalorder 1, %s13
      %p132 = scmp.lt.s32.totalorder %s13, 3
      %p133 = pnand %p131, %p132
      %p134 = pneg %p133
      // Predicated region
      $region9: #{tpu_custom_call.1} parent=5 // pred_check
        _
      $region10: #{tpu_custom_call.1} parent=5 // pred_check_branch
        %136 = sbr.rel (%p133) target = $region12
      $region11: #{tpu_custom_call.1} parent=5 // pred_region
        %s137 = ssub.s32 %s13, 1
        // Predicated region
        $region13: #{tpu_custom_call.1} parent=11 // pred_check
          %p138 = pneg %p74
        $region14: #{tpu_custom_call.1} parent=11 // pred_check_branch
          %140 = sbr.rel (%p138) target = $region16
        $region15: #{tpu_custom_call.1} parent=11 // pred_region
          %s142 = ssub.s32 2048, 2048
          %143 = vsyncadd [#allocation5], %s142
          %s144 = sshll.u32 [#allocation4], 4
          %s145 = int_to_ptr.vmem [resolvable:$true] %s144
          %150 = dma.hbm_to_vmem [thread:$0]  %s1, 2048, %s145, [#allocation5], 64, 64, 4
        $region16: #{tpu_custom_call.1} parent=11 // pred_fallthru
          _
        // Predicated region
        $region17: #{tpu_custom_call.1} parent=11 // pred_check
          %p151 = pneg %p95
        $region18: #{tpu_custom_call.1} parent=11 // pred_check_branch
          %153 = sbr.rel (%p151) target = $region20
        $region19: #{tpu_custom_call.1} parent=11 // pred_region
          %s155 = ssub.s32 128, 128
          %156 = vsyncadd [#allocation5], %s155
          %s158 = sshll.u32 [#allocation6], 4
          %s159 = int_to_ptr.vmem [resolvable:$true] %s158
          %161 = dma.hbm_to_vmem [thread:$0]  %s2, 128, %s159, [#allocation5]
        $region20: #{tpu_custom_call.1} parent=11 // pred_fallthru
          _
      $region12: #{tpu_custom_call.1} parent=5 // pred_fallthru
        _
      %p162 = scmp.lt.s32.totalorder %s13, 2
      // Predicated region
      $region21: #{tpu_custom_call.1} parent=5 // pred_check
        %p163 = pneg %p162
      $region22: #{tpu_custom_call.1} parent=5 // pred_check_branch
        %165 = sbr.rel (%p163) target = $region24
      $region23: #{tpu_custom_call.1} parent=5 // pred_region
        // Predicated region
        $region25: #{tpu_custom_call.1} parent=23 // pred_check
          %p166 = pneg %p47
        $region26: #{tpu_custom_call.1} parent=23 // pred_check_branch
          %168 = sbr.rel (%p166) target = $region28
        $region27: #{tpu_custom_call.1} parent=23 // pred_region
          %s169 = sand.u32 %s37, 1
          %s170 = scalar_lea.sflag [#allocation3], %s169
          %s171 = sand.u32 %s37, 1
          %s172 = smul.addr %s171, 8
          %s173 = scalar_lea.vmem [#allocation2], %s172
          %s175 = ssub.s32 128, 128
          %176 = vsyncadd %s170, %s175
          %s177 = smul.addr %s21, 2
          %s178 = smul.addr %s20, 2
          %s179 = sadd.s32 %s177, %s178
          %s180 = smul.addr %s179, 64
          %s181 = scalar_lea.hbm %s0, %s180
          %s183 = sshll.u32 %s173, 4
          %s184 = int_to_ptr.vmem [resolvable:$true] %s183
          %186 = dma.hbm_to_vmem [thread:$0]  %s181, 128, %s184, %s170
        $region28: #{tpu_custom_call.1} parent=23 // pred_fallthru
          _
      $region24: #{tpu_custom_call.1} parent=5 // pred_fallthru
        _
      %p187 = scmp.le.s32.totalorder 1, %s13
      %p188 = scmp.lt.s32.totalorder %s13, 3
      %p189 = pnand %p187, %p188
      %p190 = pneg %p189
      // Predicated region
      $region29: #{tpu_custom_call.1} parent=5 // pred_check
        _
      $region30: #{tpu_custom_call.1} parent=5 // pred_check_branch
        %192 = sbr.rel (%p189) target = $region32
      $region31: #{tpu_custom_call.1} parent=5 // pred_region
        %s193 = ssub.s32 %s13, 1
        %s194 = sand.u32 %s40, 1
        %s195 = scalar_lea.sflag [#allocation3], %s194
        %s196 = sand.u32 %s40, 1
        %s197 = smul.addr %s196, 8
        %s198 = scalar_lea.vmem [#allocation2], %s197
        // Predicated region
        $region33: #{tpu_custom_call.1} parent=31 // pred_check
          %p199 = pneg %p53
        $region34: #{tpu_custom_call.1} parent=31 // pred_check_branch
          %201 = sbr.rel (%p199) target = $region36
        $region35: #{tpu_custom_call.1} parent=31 // pred_region
          %202 = dma.done %s195, 128
        $region36: #{tpu_custom_call.1} parent=31 // pred_fallthru
          _
        // Predicated region
        $region37: #{tpu_custom_call.1} parent=31 // pred_check
          %p203 = pneg %p74
        $region38: #{tpu_custom_call.1} parent=31 // pred_check_branch
          %205 = sbr.rel (%p203) target = $region40
        $region39: #{tpu_custom_call.1} parent=31 // pred_region
          %206 = dma.done [#allocation5], 2048
        $region40: #{tpu_custom_call.1} parent=31 // pred_fallthru
          _
        // Predicated region
        $region41: #{tpu_custom_call.1} parent=31 // pred_check
          %p207 = pneg %p95
        $region42: #{tpu_custom_call.1} parent=31 // pred_check_branch
          %209 = sbr.rel (%p207) target = $region44
        $region43: #{tpu_custom_call.1} parent=31 // pred_region
          %210 = dma.done [#allocation5], 128
        $region44: #{tpu_custom_call.1} parent=31 // pred_fallthru
          _
        %s211 = sand.u32 %s40, 1
        %s212 = scalar_lea.sflag [#allocation3], %s211
        %s213 = sand.u32 %s40, 1
        %s214 = smul.addr %s213, 8
        %s215 = scalar_lea.vmem [#allocation2], %s214
        %p216 = pneg %p53
        %p217 = pneg %p50
        %p218 = pneg %p74
        %p219 = pneg %p71
        %p220 = pneg %p95
        %p221 = pneg %p92
        %p222 = pneg %p123
        %p223 = pneg %p120
        %p224 = scmp.lt.s32.totalorder %s22, 1
        %s225 = scalar_select %p224, %s22, 1
        %p226 = scmp.lt.s32.totalorder %s23, 0
        %s227 = scalar_select %p226, %s23, 0
        %s228 = sadd.s32 %s227, %s225
        %s229 = smul.addr %s228, 8
        %s230 = scalar_lea.vmem %s3, %s229
        %p231 = scmp.lt.s32.totalorder %s22, 1
        %s232 = scalar_select %p231, %s22, 1
        %p233 = scmp.lt.s32.totalorder %s23, 0
        %s234 = scalar_select %p233, %s23, 0
        %s235 = sadd.s32 %s234, %s232
        %s236 = smul.addr %s235, 8
        %s237 = scalar_lea.vmem %s3, %s236
        %v239 = vld [vmem:[%s198] sm:$0xff]
        %v240 = vld [vmem:[#allocation4] sm:$0xf]
        %v241 = vld [vmem:[#allocation4 + $0x4] sm:$0xf]
        %v242 = vld [vmem:[#allocation4 + $0x8] sm:$0xf]
        %v243 = vld [vmem:[#allocation4 + $0xc] sm:$0xf]
        %v244 = vld [vmem:[#allocation4 + $0x10] sm:$0xf]
        %v245 = vld [vmem:[#allocation4 + $0x14] sm:$0xf]
        %v246 = vld [vmem:[#allocation4 + $0x18] sm:$0xf]
        %v247 = vld [vmem:[#allocation4 + $0x1c] sm:$0xf]
        %v248 = vld [vmem:[#allocation4 + $0x20] sm:$0xf]
        %v249 = vld [vmem:[#allocation4 + $0x24] sm:$0xf]
        %v250 = vld [vmem:[#allocation4 + $0x28] sm:$0xf]
        %v251 = vld [vmem:[#allocation4 + $0x2c] sm:$0xf]
        %v252 = vld [vmem:[#allocation4 + $0x30] sm:$0xf]
        %v253 = vld [vmem:[#allocation4 + $0x34] sm:$0xf]
        %v254 = vld [vmem:[#allocation4 + $0x38] sm:$0xf]
        %v255 = vld [vmem:[#allocation4 + $0x3c] sm:$0xf]
        %v256 = vld [vmem:[#allocation4 + $0x40] sm:$0xf]
        %v257 = vld [vmem:[#allocation4 + $0x44] sm:$0xf]
        %v258 = vld [vmem:[#allocation4 + $0x48] sm:$0xf]
        %v259 = vld [vmem:[#allocation4 + $0x4c] sm:$0xf]
        %v260 = vld [vmem:[#allocation4 + $0x50] sm:$0xf]
        %v261 = vld [vmem:[#allocation4 + $0x54] sm:$0xf]
        %v262 = vld [vmem:[#allocation4 + $0x58] sm:$0xf]
        %v263 = vld [vmem:[#allocation4 + $0x5c] sm:$0xf]
        %v264 = vld [vmem:[#allocation4 + $0x60] sm:$0xf]
        %v265 = vld [vmem:[#allocation4 + $0x64] sm:$0xf]
        %v266 = vld [vmem:[#allocation4 + $0x68] sm:$0xf]
        %v267 = vld [vmem:[#allocation4 + $0x6c] sm:$0xf]
        %v268 = vld [vmem:[#allocation4 + $0x70] sm:$0xf]
        %v269 = vld [vmem:[#allocation4 + $0x74] sm:$0xf]
        %v270 = vld [vmem:[#allocation4 + $0x78] sm:$0xf]
        %v271 = vld [vmem:[#allocation4 + $0x7c] sm:$0xf]
        %s272 = smul.u32 %s23, 8
        %s273 = scalar_lea.vmem [#allocation6], %s272
        %v274 = vld [vmem:[%s273] sm:$0xff]
        %v276 = vunpack.c.l.b16 %v239
        %v277 = vunpack.c.h.b16 %v239
        %v278 = vpack.c.b16 %v276, %v276
        %v279 = vpack.c.b16 %v277, %v277
        %v314 = vunpack.c.l.b16 %v240
        %v315 = vunpack.c.l.b16 %v241
        %v316 = vunpack.c.l.b16 %v242
        %v317 = vunpack.c.l.b16 %v243
        %v318 = vunpack.c.l.b16 %v244
        %v319 = vunpack.c.l.b16 %v245
        %v320 = vunpack.c.l.b16 %v246
        %v321 = vunpack.c.l.b16 %v247
        %v322 = vunpack.c.l.b16 %v248
        %v323 = vunpack.c.l.b16 %v249
        %v324 = vunpack.c.l.b16 %v250
        %v325 = vunpack.c.l.b16 %v251
        %v326 = vunpack.c.l.b16 %v252
        %v327 = vunpack.c.l.b16 %v253
        %v328 = vunpack.c.l.b16 %v254
        %v329 = vunpack.c.l.b16 %v255
        %v330 = vunpack.c.l.b16 %v256
        %v331 = vunpack.c.l.b16 %v257
        %v332 = vunpack.c.l.b16 %v258
        %v333 = vunpack.c.l.b16 %v259
        %v334 = vunpack.c.l.b16 %v260
        %v335 = vunpack.c.l.b16 %v261
        %v336 = vunpack.c.l.b16 %v262
        %v337 = vunpack.c.l.b16 %v263
        %v338 = vunpack.c.l.b16 %v264
        %v339 = vunpack.c.l.b16 %v265
        %v340 = vunpack.c.l.b16 %v266
        %v341 = vunpack.c.l.b16 %v267
        %v342 = vunpack.c.l.b16 %v268
        %v343 = vunpack.c.l.b16 %v269
        %v344 = vunpack.c.l.b16 %v270
        %v345 = vunpack.c.l.b16 %v271
        %v346 = vpack.c.b16 %v315, %v314
        %v347 = vpack.c.b16 %v317, %v316
        %v348 = vpack.c.b16 %v319, %v318
        %v349 = vpack.c.b16 %v321, %v320
        %v350 = vpack.c.b16 %v323, %v322
        %v351 = vpack.c.b16 %v325, %v324
        %v352 = vpack.c.b16 %v327, %v326
        %v353 = vpack.c.b16 %v329, %v328
        %v354 = vpack.c.b16 %v331, %v330
        %v355 = vpack.c.b16 %v333, %v332
        %v356 = vpack.c.b16 %v335, %v334
        %v357 = vpack.c.b16 %v337, %v336
        %v358 = vpack.c.b16 %v339, %v338
        %v359 = vpack.c.b16 %v341, %v340
        %v360 = vpack.c.b16 %v343, %v342
        %v361 = vpack.c.b16 %v345, %v344
        %378 = vmatprep.subr.bf16.mxu0 0
        %379 = vmatpush1.bf16.msra.mxu0 %v346
        %380 = vmatprep.subr.bf16.mxu0 0
        %381 = vmatpush1.bf16.msra.mxu0 %v347
        %382 = vmatprep.subr.bf16.mxu0 0
        %383 = vmatpush1.bf16.msra.mxu0 %v348
        %384 = vmatprep.subr.bf16.mxu0 0
        %385 = vmatpush1.bf16.msra.mxu0 %v349
        %386 = vmatprep.subr.bf16.mxu0 0
        %387 = vmatpush1.bf16.msra.mxu0 %v350
        %388 = vmatprep.subr.bf16.mxu0 0
        %389 = vmatpush1.bf16.msra.mxu0 %v351
        %390 = vmatprep.subr.bf16.mxu0 0
        %391 = vmatpush1.bf16.msra.mxu0 %v352
        %392 = vmatprep.subr.bf16.mxu0 0
        %393 = vmatpush1.bf16.msra.mxu0 %v353
        %394 = vmatprep.subr.bf16.mxu0 0
        %395 = vmatpush1.bf16.msra.mxu0 %v354
        %396 = vmatprep.subr.bf16.mxu0 0
        %397 = vmatpush1.bf16.msra.mxu0 %v355
        %398 = vmatprep.subr.bf16.mxu0 0
        %399 = vmatpush1.bf16.msra.mxu0 %v356
        %400 = vmatprep.subr.bf16.mxu0 0
        %401 = vmatpush1.bf16.msra.mxu0 %v357
        %402 = vmatprep.subr.bf16.mxu0 0
        %403 = vmatpush1.bf16.msra.mxu0 %v358
        %404 = vmatprep.subr.bf16.mxu0 0
        %405 = vmatpush1.bf16.msra.mxu0 %v359
        %406 = vmatprep.subr.bf16.mxu0 0
        %407 = vmatpush1.bf16.msra.mxu0 %v360
        %408 = vmatprep.subr.bf16.mxu0 0
        %409 = vmatpush1.bf16.msra.mxu0 %v361
        %410 = vmatprep.mubr.bf16.mxu0 %v279
        %411 = vmatmul.mubr.bf16.gmra.mrb[0].mxu0 %v278
        %v412 = vpop.f32.mrb[0].mxu0
        %v413 = vadd.f32 %v274, %v412
        %v414 = vpop.f32.mrb[0].mxu0
        %v415 = vpop.f32.mrb[0].mxu0
        %v416 = vpop.f32.mrb[0].mxu0
        %417 = vdwg.mxu0
        %418 = vst [vmem:[%s237] sm:$0xff] %v413
        %p419 = scmp.lt.s32.totalorder %s22, 1
        %s420 = scalar_select %p419, %s22, 1
        %p421 = scmp.lt.s32.totalorder %s23, 0
        %s422 = scalar_select %p421, %s23, 0
        %s423 = sadd.s32 %s422, %s420
        %s424 = smul.addr %s423, 8
        %s425 = scalar_lea.vmem %s3, %s424
        // Predicated region
        $region45: #{tpu_custom_call.1} parent=31 // pred_check
          %p426 = pneg %p120
        $region46: #{tpu_custom_call.1} parent=31 // pred_check_branch
          %428 = sbr.rel (%p426) target = $region48
        $region47: #{tpu_custom_call.1} parent=31 // pred_region
          _
        $region48: #{tpu_custom_call.1} parent=31 // pred_fallthru
          _
      $region32: #{tpu_custom_call.1} parent=5 // pred_fallthru
        _
      %p429 = scmp.le.s32.totalorder 2, %s13
      // Predicated region
      $region49: #{tpu_custom_call.1} parent=5 // pred_check
        %p430 = pneg %p429
      $region50: #{tpu_custom_call.1} parent=5 // pred_check_branch
        %432 = sbr.rel (%p430) target = $region52
      $region51: #{tpu_custom_call.1} parent=5 // pred_region
        %s433 = ssub.s32 %s13, 2
        // Predicated region
        $region53: #{tpu_custom_call.1} parent=51 // pred_check
          %p434 = pneg %p126
        $region54: #{tpu_custom_call.1} parent=51 // pred_check_branch
          %436 = sbr.rel (%p434) target = $region56
        $region55: #{tpu_custom_call.1} parent=51 // pred_region
          %p437 = scmp.lt.s32.totalorder %s24, 1
          %s438 = scalar_select %p437, %s24, 1
          %p439 = scmp.lt.s32.totalorder %s25, 0
          %s440 = scalar_select %p439, %s25, 0
          %s441 = sadd.s32 %s440, %s438
          %s442 = smul.addr %s441, 8
          %s443 = scalar_lea.vmem %s3, %s442
        $region56: #{tpu_custom_call.1} parent=51 // pred_fallthru
          _
      $region52: #{tpu_custom_call.1} parent=5 // pred_fallthru
        _
    $region6: #{tpu_custom_call.1} parent=1 // loop_footer
      %s17 = sadd.s32 1, %s13
    $region7: #{tpu_custom_call.1} parent=1 // loop_footer_branch
      %12 = sbr.rel target = $region3
    $region8: #{tpu_custom_call.1} parent=1 // loop_exit
      _
    %444 = vsyncpa [#allocation3], 1
    %s445 = scalar_lea.sflag [#allocation3], 1
    %446 = vsyncpa %s445, 1
    %447 = vsyncpa [#allocation5], 1

</llo_original>
